<compile_context>
chip_gen: v7x
topology: tpu7x:2x2x1
jax: 0.10.0
libtpu: 0.0.40
codegen_flags: <defaults>
</compile_context>

<pallas_src>
import math
import functools

import jax
import jax.numpy as jnp
from jax import lax
from jax.experimental import pallas as pl
from jax.experimental.pallas import tpu as pltpu


def _gated_conv_kernel(x_ref, w_ref, b_ref, o_ref, *, K, Wp, Cin, Cout, n):
    """One batch-image grid step.

    x_ref : (1, Cin, slab)        f32  zero-padded, spatially-flattened image
    w_ref : (2*Cout, K*K*Cin)     bf16 [features; gate] weights, im2col layout
    b_ref : (2*Cout, 1)           f32  [features; gate] biases
    o_ref : (1, Cout, n)               n = H*Wp output positions (lane-dense)
    """
    pad = K // 2
    xf = x_ref[0]                                         # (Cin, slab) f32, single load

    # Identity residual == the original pixel value (centre tap), kept in f32.
    c0 = pad * (Wp + 1)
    residual = xf[:, c0:c0 + n]                           # (Cin, n) f32

    # Cast the whole slab to bf16 once, THEN build the K*K shifted taps.
    xb = xf.astype(jnp.bfloat16)                          # (Cin, slab) bf16

    pieces = []
    for kh in range(K):
        for kw in range(K):
            start = kh * Wp + kw                          # static lane offset
            pieces.append(xb[:, start:start + n])         # (Cin, n) bf16
    stacked = jnp.concatenate(pieces, axis=0)             # (K*K*Cin, n) bf16

    # One lane-dense MXU matmul produces features AND gate together
    # (bf16 operands, f32 accumulation), followed by one broadcast bias add.
    acc = jnp.dot(w_ref[...], stacked,
                  preferred_element_type=jnp.float32)     # (2*Cout, n) f32
    acc = acc + b_ref[...]

    features = acc[:Cout, :]                              # activation=None -> identity
    gate = jax.nn.sigmoid(acc[Cout:, :])                  # EUP
    o_ref[0] = (features * gate + residual).astype(o_ref.dtype)


def gated_conv2d_pallas(x_nchw, wf_oihw, bf, wg_oihw, bg):
    """Forward pass of GatedConv2d (module defaults) as a Pallas TPU kernel.

    x_nchw: [B, Cin, H, W] (PyTorch layout, kept NCHW end-to-end)
    wf/wg:  [Cout, Cin, K, K] conv weights, bf/bg: [Cout] biases
    returns [B, Cout, H, W]
    """
    B, Cin, H, W = x_nchw.shape
    Cout, Cin_w, K, K2 = wf_oihw.shape
    assert K == K2 and Cin_w == Cin
    assert K % 2 == 1
    pad = K // 2                          # "same" padding (module default K=3, pad=1)
    assert Cin == Cout, "identity residual path requires Cin == Cout"
    # TODO(synk): stride != 1 / Cin != Cout (downsample 1x1 conv), a non-None
    # activation, the local_condition bias path, and H-tiling for the B==1 /
    # VMEM-bound regime are not implemented here.

    Hp, Wp = H + 2 * pad, W + 2 * pad
    n = H * Wp
    KKCin = K * K * Cin

    # ---- single-pass layout prep (one Pad HLO + free reshape, stays NCHW) ---
    # Pad H by (pad, pad+1) rows and W by (2*pad, 0) cols, then flatten the
    # spatial dims onto the lane axis.  x[r, c] lands at flat index
    # (r+pad)*Wp + c + 2*pad, so conv tap (kh, kw) of every output position is
    # the contiguous slice [kh*Wp+kw : kh*Wp+kw + n]; out-of-image taps land in
    # zero-pad lanes.  No second flat pad, no halo'd slab stacking.
    xflat = jnp.pad(x_nchw, ((0, 0), (0, 0), (pad, pad + 1), (2 * pad, 0)))
    slab = (Hp + 1) * Wp
    xflat = xflat.reshape(B, Cin, slab)

    # im2col weights: (Cout, Cin, K, K) -> (Cout, K*K*Cin) in (kh, kw, cin)
    # order to match the tap stacking; features & gate concatenated along Cout
    # so a single matmul produces both.  bf16 operands for the MXU.
    def _w(w):
        return jnp.transpose(w, (0, 2, 3, 1)).reshape(Cout, KKCin)

    w_cat = jnp.concatenate([_w(wf_oihw), _w(wg_oihw)], axis=0).astype(jnp.bfloat16)
    b_cat = jnp.concatenate([bf, bg]).reshape(2 * Cout, 1).astype(jnp.float32)

    kernel = functools.partial(_gated_conv_kernel,
                               K=K, Wp=Wp, Cin=Cin, Cout=Cout, n=n)

    # VMEM budget derived from actual buffers (double-buffered IO + in-kernel
    # temporaries) with generous headroom for Mosaic-internal scratch.
    io_bytes = 2 * (Cin * slab * 4 + Cout * n * 4) + w_cat.size * 2 + b_cat.size * 4
    tmp_bytes = Cin * slab * 2 + KKCin * n * 2 + 4 * (2 * Cout) * n * 4
    vmem_limit = int(max(4 * (io_bytes + tmp_bytes), 8 * 1024 * 1024))

    cost = pl.CostEstimate(
        flops=2 * B * (2 * Cout) * KKCin * n + 3 * B * Cout * n,
        transcendentals=B * Cout * n,
        bytes_accessed=(B * Cin * slab * 4 + B * Cout * n * 4
                        + w_cat.size * 2 + b_cat.size * 4),
    )

    out_flat = pl.pallas_call(
        kernel,
        out_shape=jax.ShapeDtypeStruct((B, Cout, n), x_nchw.dtype),
        grid_spec=pltpu.PrefetchScalarGridSpec(
            num_scalar_prefetch=0,
            grid=(B,),
            in_specs=[
                pl.BlockSpec((1, Cin, slab), lambda b: (b, 0, 0)),
                pl.BlockSpec((2 * Cout, KKCin), lambda b: (0, 0)),
                pl.BlockSpec((2 * Cout, 1), lambda b: (0, 0)),
            ],
            out_specs=pl.BlockSpec((1, Cout, n), lambda b: (b, 0, 0)),
        ),
        compiler_params=pltpu.CompilerParams(
            dimension_semantics=("parallel",),     # batch axis -> v7x's 2 TCs
            vmem_limit_bytes=vmem_limit),
        cost_estimate=cost,
    )(xflat, w_cat, b_cat)

    # Free contiguous reshape + one column slice (drops the padded columns that
    # keep in-kernel stores lane-dense); no transpose pass.
    out = out_flat.reshape(B, Cout, H, Wp)
    return out[:, :, :, pad:pad + W]


def gated_conv2d_ref(x, wf, bf, wg, bg, *, pad=1):
    """Plain-JAX reference mirroring the PyTorch forward (NCHW)."""
    dn = ('NCHW', 'OIHW', 'NCHW')
    conv = lambda inp, w: lax.conv_general_dilated(
        inp, w, window_strides=(1, 1), padding=[(pad, pad), (pad, pad)],
        dimension_numbers=dn)
    features = conv(x, wf) + bf[None, :, None, None]
    gate = jax.nn.sigmoid(conv(x, wg) + bg[None, :, None, None])
    return features * gate + x


if __name__ == "__main__":
    B, C, H, W, K = 2, 8, 16, 16, 3
    key = jax.random.PRNGKey(0)
    kx, kwf, kbf, kwg, kbg = jax.random.split(key, 5)

    x = jax.random.normal(kx, (B, C, H, W), jnp.float32)

    # Deterministic init mimicking nn.Conv2d default (uniform +/- 1/sqrt(fan_in)).
    fan_in = C * K * K
    bound = 1.0 / math.sqrt(fan_in)
    wf = jax.random.uniform(kwf, (C, C, K, K), jnp.float32, -bound, bound)
    bf = jax.random.uniform(kbf, (C,), jnp.float32, -bound, bound)
    wg = jax.random.uniform(kwg, (C, C, K, K), jnp.float32, -bound, bound)
    bg = jax.random.uniform(kbg, (C,), jnp.float32, -bound, bound)

    out = gated_conv2d_pallas(x, wf, bf, wg, bg)
    out = jax.block_until_ready(out)

    ref = gated_conv2d_ref(x, wf, bf, wg, bg)
    err = float(jnp.max(jnp.abs(out - ref)))
    assert out.shape == (B, C, H, W), out.shape
    # bf16 MXU operands (f32 accumulation, f32 residual) -> small rounding slack.
    assert err < 5e-2, f"max abs err {err}"

    print("KERNEL_OK")
</pallas_src>

<mosaic_0001>
module attributes {stable_mosaic.version = 11 : i64} {
  func.func @_gated_conv_kernel(%arg0: i32, %arg1: memref<1x8x342xf32, #tpu.memory_space<vmem>>, %arg2: memref<16x72xbf16, #tpu.memory_space<vmem>>, %arg3: memref<16x1xf32, #tpu.memory_space<vmem>>, %arg4: memref<1x8x288xf32, #tpu.memory_space<vmem>>) attributes {dimension_semantics = [#tpu.dimension_semantics<parallel>], iteration_bounds = array<i64: 2>, scalar_prefetch = 0 : i64, scratch_operands = 0 : i64, tpu.core_type = #tpu.core_type<tc>, window_params = [{transform_indices = @transform_0, window_bounds = array<i64: 1, 8, 342>}, {pipeline_mode = #tpu.pipeline_mode<synchronous>, transform_indices = @transform_1, window_bounds = array<i64: 16, 72>}, {pipeline_mode = #tpu.pipeline_mode<synchronous>, transform_indices = @transform_2, window_bounds = array<i64: 16, 1>}, {transform_indices = @transform_3, window_bounds = array<i64: 1, 8, 288>}]} {
    %c0 = arith.constant 0 : index
    %c0_0 = arith.constant 0 : index
    %c0_1 = arith.constant 0 : index
    %0 = vector.load %arg1[%c0, %c0_0, %c0_1] : memref<1x8x342xf32, #tpu.memory_space<vmem>>, vector<1x8x342xf32>
    %1 = vector.shape_cast %0 : vector<1x8x342xf32> to vector<8x342xf32>
    %2 = vector.extract_strided_slice %1 {offsets = [0, 19], sizes = [8, 288], strides = [1, 1]} : vector<8x342xf32> to vector<8x288xf32>
    %3 = arith.truncf %1 : vector<8x342xf32> to vector<8x342xbf16>
    %4 = vector.extract_strided_slice %3 {offsets = [0, 0], sizes = [8, 288], strides = [1, 1]} : vector<8x342xbf16> to vector<8x288xbf16>
    %5 = vector.extract_strided_slice %3 {offsets = [0, 1], sizes = [8, 288], strides = [1, 1]} : vector<8x342xbf16> to vector<8x288xbf16>
    %6 = vector.extract_strided_slice %3 {offsets = [0, 2], sizes = [8, 288], strides = [1, 1]} : vector<8x342xbf16> to vector<8x288xbf16>
    %7 = vector.extract_strided_slice %3 {offsets = [0, 18], sizes = [8, 288], strides = [1, 1]} : vector<8x342xbf16> to vector<8x288xbf16>
    %8 = vector.extract_strided_slice %3 {offsets = [0, 19], sizes = [8, 288], strides = [1, 1]} : vector<8x342xbf16> to vector<8x288xbf16>
    %9 = vector.extract_strided_slice %3 {offsets = [0, 20], sizes = [8, 288], strides = [1, 1]} : vector<8x342xbf16> to vector<8x288xbf16>
    %10 = vector.extract_strided_slice %3 {offsets = [0, 36], sizes = [8, 288], strides = [1, 1]} : vector<8x342xbf16> to vector<8x288xbf16>
    %11 = vector.extract_strided_slice %3 {offsets = [0, 37], sizes = [8, 288], strides = [1, 1]} : vector<8x342xbf16> to vector<8x288xbf16>
    %12 = vector.extract_strided_slice %3 {offsets = [0, 38], sizes = [8, 288], strides = [1, 1]} : vector<8x342xbf16> to vector<8x288xbf16>
    %13 = tpu.concatenate %4, %5, %6, %7, %8, %9, %10, %11, %12 in 0 : vector<8x288xbf16>, vector<8x288xbf16>, vector<8x288xbf16>, vector<8x288xbf16>, vector<8x288xbf16>, vector<8x288xbf16>, vector<8x288xbf16>, vector<8x288xbf16>, vector<8x288xbf16> -> vector<72x288xbf16>
    %c0_2 = arith.constant 0 : index
    %c0_3 = arith.constant 0 : index
    %14 = vector.load %arg2[%c0_2, %c0_3] : memref<16x72xbf16, #tpu.memory_space<vmem>>, vector<16x72xbf16>
    %cst = arith.constant dense<0.000000e+00> : vector<16x288xf32>
    %15 = tpu.matmul %14, %13, %cst {dimension_numbers = #tpu.dot_dimension_numbers<[1], [0], [0], [1], [0, 0, 1, 1], [], []>} : vector<16x72xbf16>, vector<72x288xbf16>, vector<16x288xf32> -> vector<16x288xf32>
    %c0_4 = arith.constant 0 : index
    %c0_5 = arith.constant 0 : index
    %16 = vector.load %arg3[%c0_4, %c0_5] : memref<16x1xf32, #tpu.memory_space<vmem>>, vector<16x1xf32>
    %17 = vector.broadcast %16 : vector<16x1xf32> to vector<16x288xf32>
    %18 = arith.addf %15, %17 : vector<16x288xf32>
    %19 = vector.extract_strided_slice %18 {offsets = [0, 0], sizes = [8, 288], strides = [1, 1]} : vector<16x288xf32> to vector<8x288xf32>
    %20 = vector.extract_strided_slice %18 {offsets = [8, 0], sizes = [8, 288], strides = [1, 1]} : vector<16x288xf32> to vector<8x288xf32>
    %21 = arith.negf %20 : vector<8x288xf32>
    %22 = math.exp %21 : vector<8x288xf32>
    %cst_6 = arith.constant 1.000000e+00 : f32
    %23 = vector.broadcast %cst_6 : f32 to vector<8x288xf32>
    %24 = arith.addf %23, %22 : vector<8x288xf32>
    %25 = arith.divf %23, %24 : vector<8x288xf32>
    %26 = arith.mulf %19, %25 : vector<8x288xf32>
    %27 = arith.addf %26, %2 : vector<8x288xf32>
    %c0_7 = arith.constant 0 : index
    %c0_8 = arith.constant 0 : index
    %c0_9 = arith.constant 0 : index
    %28 = vector.load %arg4[%c0_7, %c0_8, %c0_9] : memref<1x8x288xf32, #tpu.memory_space<vmem>>, vector<1x8x288xf32>
    %29 = vector.shape_cast %28 : vector<1x8x288xf32> to vector<8x288xf32>
    %30 = vector.shape_cast %27 : vector<8x288xf32> to vector<1x8x288xf32>
    tpu.vector_store %arg4[%c0_7, %c0_8, %c0_9], %30 {strides = array<i32>} : memref<1x8x288xf32, #tpu.memory_space<vmem>>, vector<1x8x288xf32>,
    return
  }
  func.func @transform_0(%arg0: i32) -> (i32, i32, i32) {
    %c0_i32 = arith.constant 0 : i32
    %c0_i32_0 = arith.constant 0 : i32
    %c0_i32_1 = arith.constant 0 : i32
    return %arg0, %c0_i32, %c0_i32_0 : i32, i32, i32
  }
  func.func @transform_1(%arg0: i32) -> (i32, i32) {
    %c0_i32 = arith.constant 0 : i32
    %c0_i32_0 = arith.constant 0 : i32
    %c0_i32_1 = arith.constant 0 : i32
    return %c0_i32, %c0_i32_0 : i32, i32
  }
  func.func @transform_2(%arg0: i32) -> (i32, i32) {
    %c0_i32 = arith.constant 0 : i32
    %c0_i32_0 = arith.constant 0 : i32
    %c0_i32_1 = arith.constant 0 : i32
    return %c0_i32, %c0_i32_0 : i32, i32
  }
  func.func @transform_3(%arg0: i32) -> (i32, i32, i32) {
    %c0_i32 = arith.constant 0 : i32
    %c0_i32_0 = arith.constant 0 : i32
    %c0_i32_1 = arith.constant 0 : i32
    return %arg0, %c0_i32, %c0_i32_0 : i32, i32, i32
  }
}

</mosaic_0001>

<llo_original>
// kernel: tpu_custom_call.1
$region0: #{tpu_custom_call.1}
  #allocation0 [shape = 'u32[]', space=smem, size = 0x4, offset = 0x4, fixed_abs, tag = 'smem constant byte address 0x4 - core index']
  #allocation1 [shape = 'u32[144,128]{1,0:T(1,128)}', space=vmem, size = 0x12000, scoped, tag = 'internal scratch']
  %s0 = inlined_call_operand.hbm [shape: f32[2,8,342], index: 0, kind: input, shape index: {}]
  %s1 = inlined_call_operand.vmem [shape: bf16[16,72], index: 1, kind: input, shape index: {}]
  %s2 = inlined_call_operand.vmem [shape: f32[16,1], index: 2, kind: input, shape index: {}]
  %s3 = inlined_call_operand.hbm [shape: f32[2,8,288], index: 3, kind: output, shape index: {}]
  %s4 = sld [smem:[#allocation0]]
  $region49: #{tpu_custom_call.1} parent=0
    _
  %s6 = ssub.s32 1, %s4
  %s7 = scalar_select 0, %s6, %s4
  $region1: #{tpu_custom_call.1} parent=0
    #allocation2 [shape = 'u8[24576]{0}', space=vmem, size = 0x6000, scoped, tag = 'input window, operand 0']
    #allocation3 [shape = 's32[2]{0}', space=sflag, size = 0x8, scoped, tag = 'scoped memory for tpu_custom_call.1']
    #allocation4 [shape = 's32[2]{0}', space=sflag, size = 0x8, scoped, tag = 'scoped memory for tpu_custom_call.1']
    #allocation5 [shape = 'u8[24576]{0}', space=vmem, size = 0x6000, scoped, tag = 'output window, operand 0']
    %8 = vsyncpa [#allocation3], 0
    %s9 = scalar_lea.sflag [#allocation3], 1
    %10 = vsyncpa %s9, 0
    %11 = vsyncpa [#allocation4], 0
    %s12 = scalar_lea.sflag [#allocation4], 1
    %13 = vsyncpa %s12, 0
    loop: start=0, step=1, limit=4
    $region2: #{tpu_custom_call.1} parent=1 // loop_pre_header
      _
    $region3: #{tpu_custom_call.1} parent=1 // loop_header
      %s15 = sphi 0, %s19
      %p16 = scmp.ge.s32.totalorder %s15, 4
      %s25 = sphi 0, %s27
      %s28 = sphi 0, %s25
      %s29 = sphi 0, %s28
      %s45 = sphi 0, %s29
      %s49 = sphi 0, %s49
      %s51 = sphi 0, %s49
      %s52 = sphi 0, %s51
      %s66 = sphi 0, %s52
      %s70 = sphi 0, %s70
      %s72 = sphi 0, %s70
      %s73 = sphi 0, %s72
      %s87 = sphi 0, %s73
      %s93 = sphi 0, %s95
      %s96 = sphi 0, %s93
      %s97 = sphi 0, %s96
      %s113 = sphi 0, %s97
    $region4: #{tpu_custom_call.1} parent=1 // loop_header_branch
      %18 = sbr.rel (%p16) target = $region8
    $region5: #{tpu_custom_call.1} parent=1 // loop_body
      %s20 = ssub.s32 %s15, 1
      %s21 = ssub.s32 %s15, 2
      %s22 = sadd.s32 %s15, 1
      %s23 = ssub.s32 %s15, %s22
      %p24 = scmp.eq.s32.totalorder %s23, 0
      %s26 = sadd.s32 %s25, 1
      %s27 = scalar_select %p24, %s25, %s26
      %p30 = pneg %p24
      %p31 = scmp.eq.s32.totalorder %s15, 1
      %p32 = por %p30, %p31
      %p33 = scmp.ne.s32.totalorder %s25, %s28
      %p34 = scmp.eq.s32.totalorder %s15, 0
      %p35 = por %p33, %p34
      %p36 = scmp.ne.s32.totalorder %s25, %s28
      %p37 = scmp.eq.s32.totalorder %s20, 1
      %p38 = por %p36, %p37
      %p39 = scmp.ne.s32.totalorder %s28, %s29
      %p40 = scmp.eq.s32.totalorder %s20, 0
      %p41 = por %p39, %p40
      %p42 = scmp.ne.s32.totalorder %s28, %s29
      %p43 = scmp.eq.s32.totalorder %s21, 1
      %p44 = por %p42, %p43
      %p46 = scmp.ne.s32.totalorder %s29, %s45
      %p47 = scmp.eq.s32.totalorder %s21, 0
      %p48 = por %p46, %p47
      %s50 = sadd.s32 %s49, 1
      %p53 = scmp.eq.s32.totalorder %s15, 1
      %p54 = scmp.ne.s32.totalorder %s49, %s51
      %p55 = scmp.eq.s32.totalorder %s15, 0
      %p56 = por %p54, %p55
      %p57 = scmp.ne.s32.totalorder %s49, %s51
      %p58 = scmp.eq.s32.totalorder %s20, 1
      %p59 = por %p57, %p58
      %p60 = scmp.ne.s32.totalorder %s51, %s52
      %p61 = scmp.eq.s32.totalorder %s20, 0
      %p62 = por %p60, %p61
      %p63 = scmp.ne.s32.totalorder %s51, %s52
      %p64 = scmp.eq.s32.totalorder %s21, 1
      %p65 = por %p63, %p64
      %p67 = scmp.ne.s32.totalorder %s52, %s66
      %p68 = scmp.eq.s32.totalorder %s21, 0
      %p69 = por %p67, %p68
      %s71 = sadd.s32 %s70, 1
      %p74 = scmp.eq.s32.totalorder %s15, 1
      %p75 = scmp.ne.s32.totalorder %s70, %s72
      %p76 = scmp.eq.s32.totalorder %s15, 0
      %p77 = por %p75, %p76
      %p78 = scmp.ne.s32.totalorder %s70, %s72
      %p79 = scmp.eq.s32.totalorder %s20, 1
      %p80 = por %p78, %p79
      %p81 = scmp.ne.s32.totalorder %s72, %s73
      %p82 = scmp.eq.s32.totalorder %s20, 0
      %p83 = por %p81, %p82
      %p84 = scmp.ne.s32.totalorder %s72, %s73
      %p85 = scmp.eq.s32.totalorder %s21, 1
      %p86 = por %p84, %p85
      %p88 = scmp.ne.s32.totalorder %s73, %s87
      %p89 = scmp.eq.s32.totalorder %s21, 0
      %p90 = por %p88, %p89
      %s91 = ssub.s32 %s15, %s22
      %p92 = scmp.eq.s32.totalorder %s91, 0
      %s94 = sadd.s32 %s93, 1
      %s95 = scalar_select %p92, %s93, %s94
      %p98 = pneg %p92
      %p99 = scmp.eq.s32.totalorder %s15, 1
      %p100 = por %p98, %p99
      %p101 = scmp.ne.s32.totalorder %s93, %s96
      %p102 = scmp.eq.s32.totalorder %s15, 0
      %p103 = por %p101, %p102
      %p104 = scmp.ne.s32.totalorder %s93, %s96
      %p105 = scmp.eq.s32.totalorder %s20, 1
      %p106 = por %p104, %p105
      %p107 = scmp.ne.s32.totalorder %s96, %s97
      %p108 = scmp.eq.s32.totalorder %s20, 0
      %p109 = por %p107, %p108
      %p110 = scmp.ne.s32.totalorder %s96, %s97
      %p111 = scmp.eq.s32.totalorder %s21, 1
      %p112 = por %p110, %p111
      %p114 = scmp.ne.s32.totalorder %s97, %s113
      %p115 = scmp.eq.s32.totalorder %s21, 0
      %p116 = por %p114, %p115
      %p117 = scmp.le.s32.totalorder 1, %s15
      %p118 = scmp.lt.s32.totalorder %s15, 3
      %p119 = pnand %p117, %p118
      %p120 = pneg %p119
      // Predicated region
      $region9: #{tpu_custom_call.1} parent=5 // pred_check
        _
      $region10: #{tpu_custom_call.1} parent=5 // pred_check_branch
        %122 = sbr.rel (%p119) target = $region12
      $region11: #{tpu_custom_call.1} parent=5 // pred_region
        %s123 = ssub.s32 %s15, 1
        // Predicated region
        $region13: #{tpu_custom_call.1} parent=11 // pred_check
          %p124 = pneg %p62
        $region14: #{tpu_custom_call.1} parent=11 // pred_check_branch
          %126 = sbr.rel (%p124) target = $region16
        $region15: #{tpu_custom_call.1} parent=11 // pred_region
          _
        $region16: #{tpu_custom_call.1} parent=11 // pred_fallthru
          _
        // Predicated region
        $region17: #{tpu_custom_call.1} parent=11 // pred_check
          %p127 = pneg %p83
        $region18: #{tpu_custom_call.1} parent=11 // pred_check_branch
          %129 = sbr.rel (%p127) target = $region20
        $region19: #{tpu_custom_call.1} parent=11 // pred_region
          _
        $region20: #{tpu_custom_call.1} parent=11 // pred_fallthru
          _
      $region12: #{tpu_custom_call.1} parent=5 // pred_fallthru
        _
      %p130 = scmp.lt.s32.totalorder %s15, 2
      // Predicated region
      $region21: #{tpu_custom_call.1} parent=5 // pred_check
        %p131 = pneg %p130
      $region22: #{tpu_custom_call.1} parent=5 // pred_check_branch
        %133 = sbr.rel (%p131) target = $region24
      $region23: #{tpu_custom_call.1} parent=5 // pred_region
        // Predicated region
        $region25: #{tpu_custom_call.1} parent=23 // pred_check
          %p134 = pneg %p35
        $region26: #{tpu_custom_call.1} parent=23 // pred_check_branch
          %136 = sbr.rel (%p134) target = $region28
        $region27: #{tpu_custom_call.1} parent=23 // pred_region
          %s137 = sand.u32 %s25, 1
          %s138 = scalar_lea.sflag [#allocation3], %s137
          %s139 = sand.u32 %s25, 1
          %s140 = smul.addr %s139, 24
          %s141 = scalar_lea.vmem [#allocation2], %s140
          %s143 = ssub.s32 384, 384
          %144 = vsyncadd %s138, %s143
          %s145 = smul.addr %s15, 3
          %s146 = smul.addr %s145, 128
          %s147 = scalar_lea.hbm %s0, %s146
          %s149 = sshll.u32 %s141, 4
          %s150 = int_to_ptr.vmem [resolvable:$true] %s149
          %152 = dma.hbm_to_vmem [thread:$0]  %s147, 384, %s150, %s138
        $region28: #{tpu_custom_call.1} parent=23 // pred_fallthru
          _
      $region24: #{tpu_custom_call.1} parent=5 // pred_fallthru
        _
      %p153 = scmp.le.s32.totalorder 1, %s15
      %p154 = scmp.lt.s32.totalorder %s15, 3
      %p155 = pnand %p153, %p154
      %p156 = pneg %p155
      // Predicated region
      $region29: #{tpu_custom_call.1} parent=5 // pred_check
        _
      $region30: #{tpu_custom_call.1} parent=5 // pred_check_branch
        %158 = sbr.rel (%p155) target = $region32
      $region31: #{tpu_custom_call.1} parent=5 // pred_region
        %s159 = ssub.s32 %s15, 1
        %s160 = sand.u32 %s28, 1
        %s161 = scalar_lea.sflag [#allocation3], %s160
        %s162 = sand.u32 %s28, 1
        %s163 = smul.addr %s162, 24
        %s164 = scalar_lea.vmem [#allocation2], %s163
        // Predicated region
        $region33: #{tpu_custom_call.1} parent=31 // pred_check
          %p165 = pneg %p41
        $region34: #{tpu_custom_call.1} parent=31 // pred_check_branch
          %167 = sbr.rel (%p165) target = $region36
        $region35: #{tpu_custom_call.1} parent=31 // pred_region
          %168 = dma.done %s161, 384
        $region36: #{tpu_custom_call.1} parent=31 // pred_fallthru
          _
        %s169 = sand.u32 %s28, 1
        %s170 = scalar_lea.sflag [#allocation3], %s169
        %s171 = sand.u32 %s28, 1
        %s172 = smul.addr %s171, 24
        %s173 = scalar_lea.vmem [#allocation2], %s172
        %p174 = pneg %p41
        %p175 = pneg %p38
        %p176 = pneg %p62
        %p177 = pneg %p59
        %p178 = pneg %p83
        %p179 = pneg %p80
        %p180 = pneg %p109
        %p181 = pneg %p106
        %s182 = sand.u32 %s96, 1
        %s183 = scalar_lea.sflag [#allocation4], %s182
        %s184 = sand.u32 %s96, 1
        %s185 = smul.addr %s184, 24
        %s186 = scalar_lea.vmem [#allocation5], %s185
        %v188 = vld [vmem:[%s164] sm:$0xff]
        %v189 = vld [vmem:[%s164 + $0x8] sm:$0xff]
        %v190 = vld [vmem:[%s164 + $0x10] sm:$0xff]
        %v191 = vpack.c.bf16 %v188, %v188
        %v192 = vpack.c.bf16 %v189, %v189
        %v193 = vpack.c.bf16 %v190, %v190
        %v197 = vrot.slane %v191, 4
        %v198 = vrot.slane %v192, 4
        %v199 = vrot.slane %v193, 4
        %200 = vrot.lane.b32.xlu0 %v197, 127
        %v201 = vpop.permute.xlu0 %200
        %202 = vrot.lane.b32.xlu0 %v198, 127
        %v203 = vpop.permute.xlu0 %202
        %204 = vrot.lane.b32.xlu0 %v199, 127
        %v205 = vpop.permute.xlu0 %204
        %vm206 = vcmask 1039360
        %v207 = vsel %vm206, %v201, %v203
        %v208 = vsel %vm206, %v203, %v205
        %209 = vrot.lane.b32.xlu0 %v191, 126
        %v210 = vpop.permute.xlu0 %209
        %211 = vrot.lane.b32.xlu0 %v192, 126
        %v212 = vpop.permute.xlu0 %211
        %213 = vrot.lane.b32.xlu0 %v193, 126
        %v214 = vpop.permute.xlu0 %213
        %vm215 = vcmask 1031168
        %v216 = vsel %vm215, %v210, %v212
        %v217 = vsel %vm215, %v212, %v214
        %218 = vrot.lane.b32.xlu0 %v197, 110
        %v219 = vpop.permute.xlu0 %218
        %220 = vrot.lane.b32.xlu0 %v198, 110
        %v221 = vpop.permute.xlu0 %220
        %222 = vrot.lane.b32.xlu0 %v199, 110
        %v223 = vpop.permute.xlu0 %222
        %vm224 = vcmask 900096
        %v225 = vsel %vm224, %v219, %v221
        %v226 = vsel %vm224, %v221, %v223
        %227 = vrot.lane.b32.xlu0 %v191, 109
        %v228 = vpop.permute.xlu0 %227
        %229 = vrot.lane.b32.xlu0 %v192, 109
        %v230 = vpop.permute.xlu0 %229
        %231 = vrot.lane.b32.xlu0 %v193, 109
        %v232 = vpop.permute.xlu0 %231
        %vm233 = vcmask 891904
        %v234 = vsel %vm233, %v228, %v230
        %v235 = vsel %vm233, %v230, %v232
        %236 = vrot.lane.b32.xlu0 %v197, 108
        %v237 = vpop.permute.xlu0 %236
        %238 = vrot.lane.b32.xlu0 %v198, 108
        %v239 = vpop.permute.xlu0 %238
        %240 = vrot.lane.b32.xlu0 %v199, 108
        %v241 = vpop.permute.xlu0 %240
        %vm242 = vcmask 883712
        %v243 = vsel %vm242, %v237, %v239
        %v244 = vsel %vm242, %v239, %v241
        %245 = vrot.lane.b32.xlu0 %v191, 92
        %v246 = vpop.permute.xlu0 %245
        %247 = vrot.lane.b32.xlu0 %v192, 92
        %v248 = vpop.permute.xlu0 %247
        %249 = vrot.lane.b32.xlu0 %v193, 92
        %v250 = vpop.permute.xlu0 %249
        %vm251 = vcmask 752640
        %v252 = vsel %vm251, %v246, %v248
        %v253 = vsel %vm251, %v248, %v250
        %254 = vrot.lane.b32.xlu0 %v197, 91
        %v255 = vpop.permute.xlu0 %254
        %256 = vrot.lane.b32.xlu0 %v198, 91
        %v257 = vpop.permute.xlu0 %256
        %258 = vrot.lane.b32.xlu0 %v199, 91
        %v259 = vpop.permute.xlu0 %258
        %vm260 = vcmask 744448
        %v261 = vsel %vm260, %v255, %v257
        %v262 = vsel %vm260, %v257, %v259
        %263 = vrot.lane.b32.xlu0 %v191, 90
        %v264 = vpop.permute.xlu0 %263
        %265 = vrot.lane.b32.xlu0 %v192, 90
        %v266 = vpop.permute.xlu0 %265
        %267 = vrot.lane.b32.xlu0 %v193, 90
        %v268 = vpop.permute.xlu0 %267
        %vm269 = vcmask 736256
        %v270 = vsel %vm269, %v264, %v266
        %v271 = vsel %vm269, %v266, %v268
        %vm272 = vcmask 1043456
        %v275 = vsel %vm272, %v191, %v207
        %v279 = vsel %vm272, %v192, %v208
        %v283 = vsel %vm272, %v193, %v205
        %v287 = vsel %vm272, %v216, %v225
        %v291 = vsel %vm272, %v217, %v226
        %v295 = vsel %vm272, %v214, %v223
        %v299 = vsel %vm272, %v234, %v243
        %v303 = vsel %vm272, %v235, %v244
        %v307 = vsel %vm272, %v232, %v241
        %v311 = vsel %vm272, %v252, %v261
        %v315 = vsel %vm272, %v253, %v262
        %v319 = vsel %vm272, %v250, %v259
        %v321 = vld [vmem:[%s1] sm:$0xf]
        %v322 = vld [vmem:[%s1 + $0x4] sm:$0xf]
        %v323 = vld [vmem:[%s2] sm:$0xff]
        %v324 = vld [vmem:[%s2 + $0x8] sm:$0xff]
        %326 = vset.pattern.permute.xlu0 0
        %327 = vperm.xlu0 %326, %v323
        %v328 = vpop.permute.xlu0 %327
        %331 = vset.pattern.permute.xlu0 0
        %332 = vperm.xlu0 %331, %v324
        %v333 = vpop.permute.xlu0 %332
        %v337 = vunpack.c.l.b16 %v321
        %v338 = vunpack.c.l.b16 %v322
        %v339 = vpack.c.b16 %v338, %v337
        %vm340 = vcmask 588800
        %v342 = vsel %vm340, %v339, 0
        %v345 = vsel %vm272, %v270, 0
        %v348 = vsel %vm272, %v271, 0
        %v351 = vsel %vm272, %v268, 0
        %353 = vmatprep.subr.bf16.mxu0 %v279
        %354 = vmatpush1.bf16.msra.mxu0 %v275
        %355 = vmatprep.subr.bf16.mxu0 %v291
        %356 = vmatpush1.bf16.msra.mxu0 %v287
        %357 = vmatprep.subr.bf16.mxu0 %v303
        %358 = vmatpush1.bf16.msra.mxu0 %v299
        %359 = vmatprep.subr.bf16.mxu0 %v315
        %360 = vmatpush1.bf16.msra.mxu0 %v311
        %361 = vmatprep.subr.bf16.mxu0 %v348
        %362 = vmatpush1.bf16.msra.mxu0 %v345
        %363 = vmatprep.subr.bf16.mxu0 0
        %364 = vmatpush1.bf16.msra.mxu0 0
        %365 = vmatprep.subr.bf16.mxu0 0
        %366 = vmatpush1.bf16.msra.mxu0 0
        %367 = vmatprep.subr.bf16.mxu0 0
        %368 = vmatpush1.bf16.msra.mxu0 0
        %369 = vmatprep.subr.bf16.mxu0 0
        %370 = vmatpush1.bf16.msra.mxu0 0
        %371 = vmatprep.subr.bf16.mxu0 0
        %372 = vmatpush1.bf16.msra.mxu0 0
        %373 = vmatprep.subr.bf16.mxu0 0
        %374 = vmatpush1.bf16.msra.mxu0 0
        %375 = vmatprep.subr.bf16.mxu0 0
        %376 = vmatpush1.bf16.msra.mxu0 0
        %377 = vmatprep.subr.bf16.mxu0 0
        %378 = vmatpush1.bf16.msra.mxu0 0
        %379 = vmatprep.subr.bf16.mxu0 0
        %380 = vmatpush1.bf16.msra.mxu0 0
        %381 = vmatprep.subr.bf16.mxu0 0
        %382 = vmatpush1.bf16.msra.mxu0 0
        %383 = vmatprep.subr.bf16.mxu0 0
        %384 = vmatpush1.bf16.msra.mxu0 0
        %385 = vmatprep.mubr.bf16.mxu0 0
        %386 = vmatmul.mubr.bf16.gmra.mrb[0].mxu0 %v342
        %v387 = vpop.f32.mrb[0].mxu0
        %v388 = vadd.f32 %v328, %v387
        %v389 = vpop.f32.mrb[0].mxu0
        %v390 = vadd.f32 %v328, %v389
        %v391 = vpop.f32.mrb[0].mxu0
        %v392 = vadd.f32 %v333, %v391
        %v393 = vpop.f32.mrb[0].mxu0
        %v394 = vadd.f32 %v333, %v393
        %395 = vdwg.mxu0
        %396 = vmatprep.subr.bf16.mxu0 0
        %397 = vmatpush1.bf16.msra.mxu0 %v283
        %398 = vmatprep.subr.bf16.mxu0 0
        %399 = vmatpush1.bf16.msra.mxu0 %v295
        %400 = vmatprep.subr.bf16.mxu0 0
        %401 = vmatpush1.bf16.msra.mxu0 %v307
        %402 = vmatprep.subr.bf16.mxu0 0
        %403 = vmatpush1.bf16.msra.mxu0 %v319
        %404 = vmatprep.subr.bf16.mxu0 0
        %405 = vmatpush1.bf16.msra.mxu0 %v351
        %406 = vmatprep.subr.bf16.mxu0 0
        %407 = vmatpush1.bf16.msra.mxu0 0
        %408 = vmatprep.subr.bf16.mxu0 0
        %409 = vmatpush1.bf16.msra.mxu0 0
        %410 = vmatprep.subr.bf16.mxu0 0
        %411 = vmatpush1.bf16.msra.mxu0 0
        %412 = vmatprep.subr.bf16.mxu0 0
        %413 = vmatpush1.bf16.msra.mxu0 0
        %414 = vmatprep.subr.bf16.mxu0 0
        %415 = vmatpush1.bf16.msra.mxu0 0
        %416 = vmatprep.subr.bf16.mxu0 0
        %417 = vmatpush1.bf16.msra.mxu0 0
        %418 = vmatprep.subr.bf16.mxu0 0
        %419 = vmatpush1.bf16.msra.mxu0 0
        %420 = vmatprep.subr.bf16.mxu0 0
        %421 = vmatpush1.bf16.msra.mxu0 0
        %422 = vmatprep.subr.bf16.mxu0 0
        %423 = vmatpush1.bf16.msra.mxu0 0
        %424 = vmatprep.subr.bf16.mxu0 0
        %425 = vmatpush1.bf16.msra.mxu0 0
        %426 = vmatprep.subr.bf16.mxu0 0
        %427 = vmatpush1.bf16.msra.mxu0 0
        %428 = vmatprep.mubr.bf16.mxu0 0
        %429 = vmatmul.mubr.bf16.gmra.mrb[0].mxu0 %v342
        %v430 = vpop.f32.mrb[0].mxu0
        %v431 = vadd.f32 %v328, %v430
        %v432 = vpop.f32.mrb[0].mxu0
        %v433 = vpop.f32.mrb[0].mxu0
        %v434 = vadd.f32 %v333, %v433
        %v435 = vpop.f32.mrb[0].mxu0
        %436 = vdwg.mxu0
        %v437 = vxor.u32 %v392, 2147483648
        %v438 = vxor.u32 %v394, 2147483648
        %v439 = vxor.u32 %v434, 2147483648
        %v440 = vmul.f32 %v437, 1.442695
        %v441 = vpow.pop %v440
        %v442 = vmul.f32 %v438, 1.442695
        %v443 = vpow.pop %v442
        %v444 = vmul.f32 %v439, 1.442695
        %v445 = vpow.pop %v444
        %v446 = vadd.f32 %v441, 1.0
        %v447 = vadd.f32 %v443, 1.0
        %v448 = vadd.f32 %v445, 1.0
        %v449 = vrcp.pop %v446
        %v450 = vmul.f32 1.0, %v449
        %v451 = vrcp.pop %v447
        %v452 = vmul.f32 1.0, %v451
        %v453 = vrcp.pop %v448
        %v454 = vmul.f32 1.0, %v453
        %v455 = vmul.f32 %v388, %v450
        %v456 = vmul.f32 %v390, %v452
        %v457 = vmul.f32 %v431, %v454
        %461 = vrot.lane.b32.xlu0 %v188, 109
        %v462 = vpop.permute.xlu0 %461
        %463 = vrot.lane.b32.xlu0 %v189, 109
        %v464 = vpop.permute.xlu0 %463
        %465 = vrot.lane.b32.xlu0 %v190, 109
        %v466 = vpop.permute.xlu0 %465
        %vm467 = vcmask 891904
        %v468 = vsel %vm467, %v462, %v464
        %v469 = vsel %vm467, %v464, %v466
        %v473 = vadd.f32 %v455, %v468
        %v474 = vadd.f32 %v456, %v469
        %v475 = vadd.f32 %v457, %v466
        %476 = vst [vmem:[%s186] sm:$0xff] %v473
        %477 = vst [vmem:[%s186 + $0x8] sm:$0xff] %v474
        %vm478 = vcmask 261120
        %479 = vst.msk [vmem:[%s186 + $0x10] sm:$0xff] %vm478, %v475
        %s480 = sand.u32 %s96, 1
        %s481 = scalar_lea.sflag [#allocation4], %s480
        %s482 = sand.u32 %s96, 1
        %s483 = smul.addr %s482, 24
        %s484 = scalar_lea.vmem [#allocation5], %s483
        // Predicated region
        $region37: #{tpu_custom_call.1} parent=31 // pred_check
          %p485 = pneg %p106
        $region38: #{tpu_custom_call.1} parent=31 // pred_check_branch
          %487 = sbr.rel (%p485) target = $region40
        $region39: #{tpu_custom_call.1} parent=31 // pred_region
          %s489 = ssub.s32 384, 384
          %490 = vsyncadd %s481, %s489
          %s491 = smul.addr %s20, 3
          %s492 = smul.addr %s491, 128
          %s493 = scalar_lea.hbm %s3, %s492
          %s495 = sshll.u32 %s484, 4
          %s496 = int_to_ptr.vmem [resolvable:$true] %s495
          %498 = dma.vmem_to_hbm [thread:$0]  %s496, 384, %s493, %s481
        $region40: #{tpu_custom_call.1} parent=31 // pred_fallthru
          _
      $region32: #{tpu_custom_call.1} parent=5 // pred_fallthru
        _
      %p499 = scmp.le.s32.totalorder 2, %s15
      // Predicated region
      $region41: #{tpu_custom_call.1} parent=5 // pred_check
        %p500 = pneg %p499
      $region42: #{tpu_custom_call.1} parent=5 // pred_check_branch
        %502 = sbr.rel (%p500) target = $region44
      $region43: #{tpu_custom_call.1} parent=5 // pred_region
        %s503 = ssub.s32 %s15, 2
        // Predicated region
        $region45: #{tpu_custom_call.1} parent=43 // pred_check
          %p504 = pneg %p112
        $region46: #{tpu_custom_call.1} parent=43 // pred_check_branch
          %506 = sbr.rel (%p504) target = $region48
        $region47: #{tpu_custom_call.1} parent=43 // pred_region
          %s507 = sand.u32 %s97, 1
          %s508 = scalar_lea.sflag [#allocation4], %s507
          %s509 = sand.u32 %s97, 1
          %s510 = smul.addr %s509, 24
          %s511 = scalar_lea.vmem [#allocation5], %s510
          %512 = dma.done %s508, 384
        $region48: #{tpu_custom_call.1} parent=43 // pred_fallthru
          _
      $region44: #{tpu_custom_call.1} parent=5 // pred_fallthru
        _
    $region6: #{tpu_custom_call.1} parent=1 // loop_footer
      %s19 = sadd.s32 1, %s15
    $region7: #{tpu_custom_call.1} parent=1 // loop_footer_branch
      %14 = sbr.rel target = $region3
    $region8: #{tpu_custom_call.1} parent=1 // loop_exit
      _
    %513 = vsyncpa [#allocation3], 1
    %s514 = scalar_lea.sflag [#allocation3], 1
    %515 = vsyncpa %s514, 1
    %516 = vsyncpa [#allocation4], 1
    %s517 = scalar_lea.sflag [#allocation4], 1
    %518 = vsyncpa %s517, 1

</llo_original>
